<compile_context>
chip_gen: v5e
topology: v5e:2x2
jax: 0.10.0
libtpu: 0.0.40
codegen_flags: <defaults>
</compile_context>

<pallas_src>
import functools

import jax
import jax.numpy as jnp
from jax import lax
from jax.experimental import pallas as pl
from jax.experimental.pallas import tpu as pltpu


def mlp_kernel(x_ref, w1_ref, b1_ref, w2_ref, b2_ref, w3_ref, b3_ref, o_ref, *, ts):
    # x_ref : [block_b, D] f32  (native row-major batch tile)
    # w*_ref: torch nn.Linear layout [out_features, in_features], bf16
    # b1/b2 : [out, 1] bf16 ; b3: [O, 1] f32
    # o_ref : [O, block_b] f32  (lane-dense output tile)
    bf16 = jnp.bfloat16
    f32 = jnp.float32

    n_sub = x_ref.shape[0] // ts

    # Grid-invariant weights/biases (tiny) — load once per grid step.
    w1 = w1_ref[...]
    b1 = b1_ref[...]
    w2 = w2_ref[...]
    b2 = b2_ref[...]
    w3 = w3_ref[...]
    b3 = b3_ref[...]

    def body(j, carry):
        start = pl.multiple_of(j * ts, ts)

        # Load a ts-wide batch slice, transpose to feature-major in-kernel (XLU),
        # cast to bf16 for the MXU.
        xs = x_ref[pl.ds(start, ts), :]                 # [ts, D] f32
        xsT = jnp.transpose(xs).astype(bf16)            # [D, ts] bf16

        # Layer 1: Linear(D, H) + ReLU      (bf16 epilogue, f32 accumulation)
        h1 = jnp.dot(w1, xsT, preferred_element_type=f32)    # [H, ts] f32
        h1 = jnp.maximum(h1.astype(bf16) + b1, 0.0)          # [H, ts] bf16
        # Dropout(0.2): identity in eval mode.
        # TODO(synk): training-mode dropout (pltpu.prng_random_bits mask) not implemented.

        # Layer 2: Linear(H, H2) + ReLU
        h2 = jnp.dot(w2, h1, preferred_element_type=f32)     # [H2, ts] f32
        h2 = jnp.maximum(h2.astype(bf16) + b2, 0.0)          # [H2, ts] bf16

        # Layer 3: Linear(H2, O)  — lane-dense store into the output tile.
        out = jnp.dot(w3, h2, preferred_element_type=f32)    # [O, ts] f32
        o_ref[:, pl.ds(start, ts)] = out + b3
        return carry

    lax.fori_loop(0, n_sub, body, 0, unroll=True)


def mlp_regressor_forward(x, params, *, block_b=None, sub_tile=512):
    """x: [B, input_dim] float32.  params: torch-layout weights [out,in], biases [out,1]."""
    B, D = x.shape
    w1, b1 = params["w1"], params["b1"]   # [H, D],   [H, 1]
    w2, b2 = params["w2"], params["b2"]   # [H2, H],  [H2, 1]
    w3, b3 = params["w3"], params["b3"]   # [O, H2],  [O, 1]
    H, H2, O = w1.shape[0], w2.shape[0], w3.shape[0]

    if block_b is None:
        # Big tiles to amortize per-grid-step overhead; no forced split for small B.
        block_b = min(8192, pl.cdiv(B, 128) * 128)
    block_b = max(128, block_b)
    assert block_b % 128 == 0, "block_b must be a multiple of 128 (lane width)"

    # In-kernel sub-tile width (lanes) — must divide block_b, stay >= 128.
    ts = max(128, sub_tile)
    while block_b % ts != 0:
        ts //= 2
    ts = max(128, ts)

    # Pad ragged batches up to a multiple of block_b (zero rows, sliced off below).
    B_pad = pl.cdiv(B, block_b) * block_b
    if B_pad != B:
        x = jnp.pad(x, ((0, B_pad - B), (0, 0)))
    grid = (B_pad // block_b,)

    # Weights / hot biases in bf16 for the MXU / bf16 epilogue; final bias f32.
    w1b = w1.astype(jnp.bfloat16)
    w2b = w2.astype(jnp.bfloat16)
    w3b = w3.astype(jnp.bfloat16)
    b1b = b1.astype(jnp.bfloat16)
    b2b = b2.astype(jnp.bfloat16)

    flops = 2 * B_pad * (D * H + H * H2 + H2 * O)
    bytes_accessed = (B_pad * D * 4                                    # x (f32, single pass)
                      + (w1b.size + w2b.size + w3b.size) * 2
                      + (b1b.size + b2b.size) * 2 + b3.size * 4
                      + B_pad * O * 4)                                 # output

    kernel = functools.partial(mlp_kernel, ts=ts)

    outT = pl.pallas_call(
        kernel,
        out_shape=jax.ShapeDtypeStruct((O, B_pad), jnp.float32),
        grid_spec=pltpu.PrefetchScalarGridSpec(
            num_scalar_prefetch=0,
            grid=grid,
            in_specs=[
                # streamed x tile in its native [block_b, D] row-major layout
                pl.BlockSpec((block_b, D), lambda i: (i, 0)),
                # grid-invariant weights/biases (tiny)
                pl.BlockSpec((H, D), lambda i: (0, 0)),
                pl.BlockSpec((H, 1), lambda i: (0, 0)),
                pl.BlockSpec((H2, H), lambda i: (0, 0)),
                pl.BlockSpec((H2, 1), lambda i: (0, 0)),
                pl.BlockSpec((O, H2), lambda i: (0, 0)),
                pl.BlockSpec((O, 1), lambda i: (0, 0)),
            ],
            # lane-dense output tile [O, block_b]
            out_specs=pl.BlockSpec((O, block_b), lambda i: (0, i)),
        ),
        compiler_params=pltpu.CompilerParams(
            dimension_semantics=("parallel",)),
        cost_estimate=pl.CostEstimate(
            flops=flops, transcendentals=0, bytes_accessed=bytes_accessed),
    )(x, w1b, b1b, w2b, b2b, w3b, b3)

    return outT.T[:B]   # back to [B, O] (tiny), padded rows dropped


def init_params(key, input_dim, hidden_dim=64, output_dim=1):
    """Deterministic init matching torch.nn.Linear's U(-1/sqrt(fan_in), 1/sqrt(fan_in)).
    Weights stored in native torch layout [out_features, in_features]."""
    ks = jax.random.split(key, 6)

    def lin(kw, kb, fan_in, fan_out):
        bound = 1.0 / jnp.sqrt(jnp.float32(fan_in))
        w = jax.random.uniform(kw, (fan_out, fan_in), jnp.float32, -bound, bound)
        b = jax.random.uniform(kb, (fan_out, 1), jnp.float32, -bound, bound)
        return w, b

    w1, b1 = lin(ks[0], ks[1], input_dim, hidden_dim)
    w2, b2 = lin(ks[2], ks[3], hidden_dim, hidden_dim // 2)
    w3, b3 = lin(ks[4], ks[5], hidden_dim // 2, output_dim)
    return dict(w1=w1, b1=b1, w2=w2, b2=b2, w3=w3, b3=b3)


def mlp_reference(x, p):
    """Pure-JAX reference mirroring the kernel's numerics (bf16 MXU operands,
    f32 accumulation, bf16 bias-add/ReLU epilogue, f32 final bias)."""
    bf16, f32 = jnp.bfloat16, jnp.float32
    xb = x.astype(bf16)
    w1 = p["w1"].astype(bf16)
    w2 = p["w2"].astype(bf16)
    w3 = p["w3"].astype(bf16)
    b1 = p["b1"].astype(bf16).reshape(1, -1)
    b2 = p["b2"].astype(bf16).reshape(1, -1)
    b3 = p["b3"].reshape(1, -1)

    h1 = jnp.dot(xb, w1.T, preferred_element_type=f32)
    h1 = jnp.maximum(h1.astype(bf16) + b1, 0.0)
    h2 = jnp.dot(h1, w2.T, preferred_element_type=f32)
    h2 = jnp.maximum(h2.astype(bf16) + b2, 0.0)
    return jnp.dot(h2, w3.T, preferred_element_type=f32) + b3


if __name__ == "__main__":
    key = jax.random.PRNGKey(0)
    kx, kp = jax.random.split(key)

    B, input_dim, hidden_dim, output_dim = 1024, 16, 64, 1
    x = jax.random.normal(kx, (B, input_dim), jnp.float32)
    params = init_params(kp, input_dim, hidden_dim, output_dim)

    ref = mlp_reference(x, params)

    # Multi-step grid: block_b=256 -> grid=(4,) exercises pipelining / megacore.
    out = jax.block_until_ready(mlp_regressor_forward(x, params, block_b=256))
    assert out.shape == (B, output_dim)
    assert jnp.allclose(out, ref, atol=1e-2, rtol=1e-2), "mismatch vs reference"

    # Ragged-batch path (zero padding + default block_b / sub-tile selection).
    x_small = x[:100]
    out_small = jax.block_until_ready(mlp_regressor_forward(x_small, params))
    assert out_small.shape == (100, output_dim)
    assert jnp.allclose(out_small, ref[:100], atol=1e-2, rtol=1e-2), "ragged mismatch"

    print("KERNEL_OK")
</pallas_src>

<mosaic_0001>
module attributes {stable_mosaic.version = 11 : i64} {
  func.func @mlp_kernel(%arg0: i32, %arg1: memref<256x16xf32, #tpu.memory_space<vmem>>, %arg2: memref<64x16xbf16, #tpu.memory_space<vmem>>, %arg3: memref<64x1xbf16, #tpu.memory_space<vmem>>, %arg4: memref<32x64xbf16, #tpu.memory_space<vmem>>, %arg5: memref<32x1xbf16, #tpu.memory_space<vmem>>, %arg6: memref<1x32xbf16, #tpu.memory_space<vmem>>, %arg7: memref<1x1xf32, #tpu.memory_space<vmem>>, %arg8: memref<1x256xf32, #tpu.memory_space<vmem>>) attributes {dimension_semantics = [#tpu.dimension_semantics<parallel>], iteration_bounds = array<i64: 4>, scalar_prefetch = 0 : i64, scratch_operands = 0 : i64, tpu.core_type = #tpu.core_type<tc>, window_params = [{transform_indices = @transform_0, window_bounds = array<i64: 256, 16>}, {pipeline_mode = #tpu.pipeline_mode<synchronous>, transform_indices = @transform_1, window_bounds = array<i64: 64, 16>}, {pipeline_mode = #tpu.pipeline_mode<synchronous>, transform_indices = @transform_2, window_bounds = array<i64: 64, 1>}, {pipeline_mode = #tpu.pipeline_mode<synchronous>, transform_indices = @transform_3, window_bounds = array<i64: 32, 64>}, {pipeline_mode = #tpu.pipeline_mode<synchronous>, transform_indices = @transform_4, window_bounds = array<i64: 32, 1>}, {pipeline_mode = #tpu.pipeline_mode<synchronous>, transform_indices = @transform_5, window_bounds = array<i64: 1, 32>}, {pipeline_mode = #tpu.pipeline_mode<synchronous>, transform_indices = @transform_6, window_bounds = array<i64: 1, 1>}, {transform_indices = @transform_7, window_bounds = array<i64: 1, 256>}]} {
    %c0 = arith.constant 0 : index
    %c0_0 = arith.constant 0 : index
    %0 = vector.load %arg2[%c0, %c0_0] : memref<64x16xbf16, #tpu.memory_space<vmem>>, vector<64x16xbf16>
    %c0_1 = arith.constant 0 : index
    %c0_2 = arith.constant 0 : index
    %1 = vector.load %arg3[%c0_1, %c0_2] : memref<64x1xbf16, #tpu.memory_space<vmem>>, vector<64x1xbf16>
    %c0_3 = arith.constant 0 : index
    %c0_4 = arith.constant 0 : index
    %2 = vector.load %arg4[%c0_3, %c0_4] : memref<32x64xbf16, #tpu.memory_space<vmem>>, vector<32x64xbf16>
    %c0_5 = arith.constant 0 : index
    %c0_6 = arith.constant 0 : index
    %3 = vector.load %arg5[%c0_5, %c0_6] : memref<32x1xbf16, #tpu.memory_space<vmem>>, vector<32x1xbf16>
    %c0_7 = arith.constant 0 : index
    %c0_8 = arith.constant 0 : index
    %4 = vector.load %arg6[%c0_7, %c0_8] : memref<1x32xbf16, #tpu.memory_space<vmem>>, vector<1x32xbf16>
    %c0_9 = arith.constant 0 : index
    %c0_10 = arith.constant 0 : index
    %5 = vector.load %arg7[%c0_9, %c0_10] : memref<1x1xf32, #tpu.memory_space<vmem>>, vector<1x1xf32>
    %c0_i32 = arith.constant 0 : i32
    %c256_i32 = arith.constant 256 : i32
    %6 = arith.muli %c0_i32, %c256_i32 : i32
    %7 = tpu.assume_multiple %6, 256 : i32
    %8 = arith.index_cast %7 : i32 to index
    %c0_11 = arith.constant 0 : index
    %9 = vector.load %arg1[%8, %c0_11] : memref<256x16xf32, #tpu.memory_space<vmem>>, vector<256x16xf32>
    %10 = tpu.transpose %9, [1, 0] : vector<256x16xf32> -> vector<16x256xf32>
    %11 = arith.truncf %10 : vector<16x256xf32> to vector<16x256xbf16>
    %cst = arith.constant dense<0.000000e+00> : vector<64x256xf32>
    %12 = tpu.matmul %0, %11, %cst {dimension_numbers = #tpu.dot_dimension_numbers<[1], [0], [0], [1], [0, 0, 1, 1], [], []>} : vector<64x16xbf16>, vector<16x256xbf16>, vector<64x256xf32> -> vector<64x256xf32>
    %13 = arith.truncf %12 : vector<64x256xf32> to vector<64x256xbf16>
    %14 = vector.broadcast %1 : vector<64x1xbf16> to vector<64x256xbf16>
    %15 = arith.addf %13, %14 : vector<64x256xbf16>
    %cst_12 = arith.constant 0.000000e+00 : bf16
    %16 = vector.broadcast %cst_12 : bf16 to vector<64x256xbf16>
    %17 = arith.maximumf %15, %16 : vector<64x256xbf16>
    %cst_13 = arith.constant dense<0.000000e+00> : vector<32x256xf32>
    %18 = tpu.matmul %2, %17, %cst_13 {dimension_numbers = #tpu.dot_dimension_numbers<[1], [0], [0], [1], [0, 0, 1, 1], [], []>} : vector<32x64xbf16>, vector<64x256xbf16>, vector<32x256xf32> -> vector<32x256xf32>
    %19 = arith.truncf %18 : vector<32x256xf32> to vector<32x256xbf16>
    %20 = vector.broadcast %3 : vector<32x1xbf16> to vector<32x256xbf16>
    %21 = arith.addf %19, %20 : vector<32x256xbf16>
    %cst_14 = arith.constant 0.000000e+00 : bf16
    %22 = vector.broadcast %cst_14 : bf16 to vector<32x256xbf16>
    %23 = arith.maximumf %21, %22 : vector<32x256xbf16>
    %cst_15 = arith.constant dense<0.000000e+00> : vector<1x256xf32>
    %24 = tpu.matmul %4, %23, %cst_15 {dimension_numbers = #tpu.dot_dimension_numbers<[1], [0], [0], [1], [0, 0, 1, 1], [], []>} : vector<1x32xbf16>, vector<32x256xbf16>, vector<1x256xf32> -> vector<1x256xf32>
    %25 = vector.broadcast %5 : vector<1x1xf32> to vector<1x256xf32>
    %26 = arith.addf %24, %25 : vector<1x256xf32>
    %c0_16 = arith.constant 0 : index
    %27 = arith.index_cast %7 : i32 to index
    %28 = vector.load %arg8[%c0_16, %27] : memref<1x256xf32, #tpu.memory_space<vmem>>, vector<1x256xf32>
    tpu.vector_store %arg8[%c0_16, %27], %26 {strides = array<i32>} : memref<1x256xf32, #tpu.memory_space<vmem>>, vector<1x256xf32>,
    %c1_i32 = arith.constant 1 : i32
    return
  }
  func.func @transform_0(%arg0: i32) -> (i32, i32) {
    %c0_i32 = arith.constant 0 : i32
    %c0_i32_0 = arith.constant 0 : i32
    return %arg0, %c0_i32 : i32, i32
  }
  func.func @transform_1(%arg0: i32) -> (i32, i32) {
    %c0_i32 = arith.constant 0 : i32
    %c0_i32_0 = arith.constant 0 : i32
    %c0_i32_1 = arith.constant 0 : i32
    return %c0_i32, %c0_i32_0 : i32, i32
  }
  func.func @transform_2(%arg0: i32) -> (i32, i32) {
    %c0_i32 = arith.constant 0 : i32
    %c0_i32_0 = arith.constant 0 : i32
    %c0_i32_1 = arith.constant 0 : i32
    return %c0_i32, %c0_i32_0 : i32, i32
  }
  func.func @transform_3(%arg0: i32) -> (i32, i32) {
    %c0_i32 = arith.constant 0 : i32
    %c0_i32_0 = arith.constant 0 : i32
    %c0_i32_1 = arith.constant 0 : i32
    return %c0_i32, %c0_i32_0 : i32, i32
  }
  func.func @transform_4(%arg0: i32) -> (i32, i32) {
    %c0_i32 = arith.constant 0 : i32
    %c0_i32_0 = arith.constant 0 : i32
    %c0_i32_1 = arith.constant 0 : i32
    return %c0_i32, %c0_i32_0 : i32, i32
  }
  func.func @transform_5(%arg0: i32) -> (i32, i32) {
    %c0_i32 = arith.constant 0 : i32
    %c0_i32_0 = arith.constant 0 : i32
    %c0_i32_1 = arith.constant 0 : i32
    return %c0_i32, %c0_i32_0 : i32, i32
  }
  func.func @transform_6(%arg0: i32) -> (i32, i32) {
    %c0_i32 = arith.constant 0 : i32
    %c0_i32_0 = arith.constant 0 : i32
    %c0_i32_1 = arith.constant 0 : i32
    return %c0_i32, %c0_i32_0 : i32, i32
  }
  func.func @transform_7(%arg0: i32) -> (i32, i32) {
    %c0_i32 = arith.constant 0 : i32
    %c0_i32_0 = arith.constant 0 : i32
    return %c0_i32, %arg0 : i32, i32
  }
}

</mosaic_0001>

<llo_original>
// kernel: tpu_custom_call.1
$region0: #{tpu_custom_call.1}
  #allocation0 [shape = 'u32[]', space=smem, size = 0x4, offset = 0x4, fixed_abs, tag = 'smem constant byte address 0x4 - core index']
  #allocation1 [shape = 'u32[72,128]{1,0:T(1,128)}', space=vmem, size = 0x9000, scoped, tag = 'internal scratch']
  #allocation2 [shape = 'f32[1,1]{1,0:T(1,128)S(1)}', space=vmem, size = 0x200, scoped, tag = 'scoped memory for tpu_custom_call.1']
  %s0 = inlined_call_operand.vmem [shape: f32[1024,16], index: 0, kind: input, shape index: {}]
  %s1 = inlined_call_operand.vmem [shape: bf16[64,16], index: 1, kind: input, shape index: {}]
  %s2 = inlined_call_operand.vmem [shape: bf16[64,1], index: 2, kind: input, shape index: {}]
  %s3 = inlined_call_operand.vmem [shape: bf16[32,64], index: 3, kind: input, shape index: {}]
  %s4 = inlined_call_operand.vmem [shape: bf16[32,1], index: 4, kind: input, shape index: {}]
  %s5 = inlined_call_operand.vmem [shape: bf16[1,32], index: 5, kind: input, shape index: {}]
  %s6 = inlined_call_operand.<no memory space> [shape: f32[1,1], index: 6, kind: input, shape index: {}]
  %s7 = inlined_call_operand.hbm [shape: f32[1,1024], index: 7, kind: output, shape index: {}]
  %s8 = sld [smem:[#allocation0]]
  $region61: #{tpu_custom_call.1} parent=0
    _
  %s10 = ssub.s32 1, %s8
  %s11 = scalar_select 0, %s10, %s8
  %v12 = vstv %s6
  %13 = vst [vmem:[#allocation2] sm:$0x1] %v12
  $region1: #{tpu_custom_call.1} parent=0
    #allocation3 [shape = 'u8[2048]{0}', space=vmem, size = 0x800, scoped, tag = 'output window, operand 0']
    #allocation4 [shape = 's32[2]{0}', space=sflag, size = 0x8, scoped, tag = 'scoped memory for tpu_custom_call.1']
    %14 = vsyncpa [#allocation4], 0
    %s15 = scalar_lea.sflag [#allocation4], 1
    %16 = vsyncpa %s15, 0
    loop: start=0, step=1, limit=6
    $region2: #{tpu_custom_call.1} parent=1 // loop_pre_header
      _
    $region3: #{tpu_custom_call.1} parent=1 // loop_header
      %s18 = sphi 0, %s22
      %p19 = scmp.ge.s32.totalorder %s18, 6
      %s28 = sphi 0, %s30
      %s31 = sphi 0, %s28
      %s32 = sphi 0, %s31
      %s48 = sphi 0, %s32
      %s52 = sphi 0, %s52
      %s54 = sphi 0, %s52
      %s55 = sphi 0, %s54
      %s69 = sphi 0, %s55
      %s73 = sphi 0, %s73
      %s75 = sphi 0, %s73
      %s76 = sphi 0, %s75
      %s90 = sphi 0, %s76
      %s94 = sphi 0, %s94
      %s96 = sphi 0, %s94
      %s97 = sphi 0, %s96
      %s111 = sphi 0, %s97
      %s115 = sphi 0, %s115
      %s117 = sphi 0, %s115
      %s118 = sphi 0, %s117
      %s132 = sphi 0, %s118
      %s136 = sphi 0, %s136
      %s138 = sphi 0, %s136
      %s139 = sphi 0, %s138
      %s153 = sphi 0, %s139
      %s157 = sphi 0, %s157
      %s159 = sphi 0, %s157
      %s160 = sphi 0, %s159
      %s174 = sphi 0, %s160
      %s180 = sphi 0, %s182
      %s183 = sphi 0, %s180
      %s184 = sphi 0, %s183
      %s200 = sphi 0, %s184
    $region4: #{tpu_custom_call.1} parent=1 // loop_header_branch
      %21 = sbr.rel (%p19) target = $region8
    $region5: #{tpu_custom_call.1} parent=1 // loop_body
      %s23 = ssub.s32 %s18, 1
      %s24 = ssub.s32 %s18, 2
      %s25 = sadd.s32 %s18, 1
      %s26 = ssub.s32 %s18, %s25
      %p27 = scmp.eq.s32.totalorder %s26, 0
      %s29 = sadd.s32 %s28, 1
      %s30 = scalar_select %p27, %s28, %s29
      %p33 = pneg %p27
      %p34 = scmp.eq.s32.totalorder %s18, 3
      %p35 = por %p33, %p34
      %p36 = scmp.ne.s32.totalorder %s28, %s31
      %p37 = scmp.eq.s32.totalorder %s18, 0
      %p38 = por %p36, %p37
      %p39 = scmp.ne.s32.totalorder %s28, %s31
      %p40 = scmp.eq.s32.totalorder %s23, 3
      %p41 = por %p39, %p40
      %p42 = scmp.ne.s32.totalorder %s31, %s32
      %p43 = scmp.eq.s32.totalorder %s23, 0
      %p44 = por %p42, %p43
      %p45 = scmp.ne.s32.totalorder %s31, %s32
      %p46 = scmp.eq.s32.totalorder %s24, 3
      %p47 = por %p45, %p46
      %p49 = scmp.ne.s32.totalorder %s32, %s48
      %p50 = scmp.eq.s32.totalorder %s24, 0
      %p51 = por %p49, %p50
      %s53 = sadd.s32 %s52, 1
      %p56 = scmp.eq.s32.totalorder %s18, 3
      %p57 = scmp.ne.s32.totalorder %s52, %s54
      %p58 = scmp.eq.s32.totalorder %s18, 0
      %p59 = por %p57, %p58
      %p60 = scmp.ne.s32.totalorder %s52, %s54
      %p61 = scmp.eq.s32.totalorder %s23, 3
      %p62 = por %p60, %p61
      %p63 = scmp.ne.s32.totalorder %s54, %s55
      %p64 = scmp.eq.s32.totalorder %s23, 0
      %p65 = por %p63, %p64
      %p66 = scmp.ne.s32.totalorder %s54, %s55
      %p67 = scmp.eq.s32.totalorder %s24, 3
      %p68 = por %p66, %p67
      %p70 = scmp.ne.s32.totalorder %s55, %s69
      %p71 = scmp.eq.s32.totalorder %s24, 0
      %p72 = por %p70, %p71
      %s74 = sadd.s32 %s73, 1
      %p77 = scmp.eq.s32.totalorder %s18, 3
      %p78 = scmp.ne.s32.totalorder %s73, %s75
      %p79 = scmp.eq.s32.totalorder %s18, 0
      %p80 = por %p78, %p79
      %p81 = scmp.ne.s32.totalorder %s73, %s75
      %p82 = scmp.eq.s32.totalorder %s23, 3
      %p83 = por %p81, %p82
      %p84 = scmp.ne.s32.totalorder %s75, %s76
      %p85 = scmp.eq.s32.totalorder %s23, 0
      %p86 = por %p84, %p85
      %p87 = scmp.ne.s32.totalorder %s75, %s76
      %p88 = scmp.eq.s32.totalorder %s24, 3
      %p89 = por %p87, %p88
      %p91 = scmp.ne.s32.totalorder %s76, %s90
      %p92 = scmp.eq.s32.totalorder %s24, 0
      %p93 = por %p91, %p92
      %s95 = sadd.s32 %s94, 1
      %p98 = scmp.eq.s32.totalorder %s18, 3
      %p99 = scmp.ne.s32.totalorder %s94, %s96
      %p100 = scmp.eq.s32.totalorder %s18, 0
      %p101 = por %p99, %p100
      %p102 = scmp.ne.s32.totalorder %s94, %s96
      %p103 = scmp.eq.s32.totalorder %s23, 3
      %p104 = por %p102, %p103
      %p105 = scmp.ne.s32.totalorder %s96, %s97
      %p106 = scmp.eq.s32.totalorder %s23, 0
      %p107 = por %p105, %p106
      %p108 = scmp.ne.s32.totalorder %s96, %s97
      %p109 = scmp.eq.s32.totalorder %s24, 3
      %p110 = por %p108, %p109
      %p112 = scmp.ne.s32.totalorder %s97, %s111
      %p113 = scmp.eq.s32.totalorder %s24, 0
      %p114 = por %p112, %p113
      %s116 = sadd.s32 %s115, 1
      %p119 = scmp.eq.s32.totalorder %s18, 3
      %p120 = scmp.ne.s32.totalorder %s115, %s117
      %p121 = scmp.eq.s32.totalorder %s18, 0
      %p122 = por %p120, %p121
      %p123 = scmp.ne.s32.totalorder %s115, %s117
      %p124 = scmp.eq.s32.totalorder %s23, 3
      %p125 = por %p123, %p124
      %p126 = scmp.ne.s32.totalorder %s117, %s118
      %p127 = scmp.eq.s32.totalorder %s23, 0
      %p128 = por %p126, %p127
      %p129 = scmp.ne.s32.totalorder %s117, %s118
      %p130 = scmp.eq.s32.totalorder %s24, 3
      %p131 = por %p129, %p130
      %p133 = scmp.ne.s32.totalorder %s118, %s132
      %p134 = scmp.eq.s32.totalorder %s24, 0
      %p135 = por %p133, %p134
      %s137 = sadd.s32 %s136, 1
      %p140 = scmp.eq.s32.totalorder %s18, 3
      %p141 = scmp.ne.s32.totalorder %s136, %s138
      %p142 = scmp.eq.s32.totalorder %s18, 0
      %p143 = por %p141, %p142
      %p144 = scmp.ne.s32.totalorder %s136, %s138
      %p145 = scmp.eq.s32.totalorder %s23, 3
      %p146 = por %p144, %p145
      %p147 = scmp.ne.s32.totalorder %s138, %s139
      %p148 = scmp.eq.s32.totalorder %s23, 0
      %p149 = por %p147, %p148
      %p150 = scmp.ne.s32.totalorder %s138, %s139
      %p151 = scmp.eq.s32.totalorder %s24, 3
      %p152 = por %p150, %p151
      %p154 = scmp.ne.s32.totalorder %s139, %s153
      %p155 = scmp.eq.s32.totalorder %s24, 0
      %p156 = por %p154, %p155
      %s158 = sadd.s32 %s157, 1
      %p161 = scmp.eq.s32.totalorder %s18, 3
      %p162 = scmp.ne.s32.totalorder %s157, %s159
      %p163 = scmp.eq.s32.totalorder %s18, 0
      %p164 = por %p162, %p163
      %p165 = scmp.ne.s32.totalorder %s157, %s159
      %p166 = scmp.eq.s32.totalorder %s23, 3
      %p167 = por %p165, %p166
      %p168 = scmp.ne.s32.totalorder %s159, %s160
      %p169 = scmp.eq.s32.totalorder %s23, 0
      %p170 = por %p168, %p169
      %p171 = scmp.ne.s32.totalorder %s159, %s160
      %p172 = scmp.eq.s32.totalorder %s24, 3
      %p173 = por %p171, %p172
      %p175 = scmp.ne.s32.totalorder %s160, %s174
      %p176 = scmp.eq.s32.totalorder %s24, 0
      %p177 = por %p175, %p176
      %s178 = ssub.s32 %s18, %s25
      %p179 = scmp.eq.s32.totalorder %s178, 0
      %s181 = sadd.s32 %s180, 1
      %s182 = scalar_select %p179, %s180, %s181
      %p185 = pneg %p179
      %p186 = scmp.eq.s32.totalorder %s18, 3
      %p187 = por %p185, %p186
      %p188 = scmp.ne.s32.totalorder %s180, %s183
      %p189 = scmp.eq.s32.totalorder %s18, 0
      %p190 = por %p188, %p189
      %p191 = scmp.ne.s32.totalorder %s180, %s183
      %p192 = scmp.eq.s32.totalorder %s23, 3
      %p193 = por %p191, %p192
      %p194 = scmp.ne.s32.totalorder %s183, %s184
      %p195 = scmp.eq.s32.totalorder %s23, 0
      %p196 = por %p194, %p195
      %p197 = scmp.ne.s32.totalorder %s183, %s184
      %p198 = scmp.eq.s32.totalorder %s24, 3
      %p199 = por %p197, %p198
      %p201 = scmp.ne.s32.totalorder %s184, %s200
      %p202 = scmp.eq.s32.totalorder %s24, 0
      %p203 = por %p201, %p202
      %p204 = scmp.le.s32.totalorder 1, %s18
      %p205 = scmp.lt.s32.totalorder %s18, 5
      %p206 = pnand %p204, %p205
      %p207 = pneg %p206
      // Predicated region
      $region9: #{tpu_custom_call.1} parent=5 // pred_check
        _
      $region10: #{tpu_custom_call.1} parent=5 // pred_check_branch
        %209 = sbr.rel (%p206) target = $region12
      $region11: #{tpu_custom_call.1} parent=5 // pred_region
        %s210 = ssub.s32 %s18, 1
        // Predicated region
        $region13: #{tpu_custom_call.1} parent=11 // pred_check
          %p211 = pneg %p65
        $region14: #{tpu_custom_call.1} parent=11 // pred_check_branch
          %213 = sbr.rel (%p211) target = $region16
        $region15: #{tpu_custom_call.1} parent=11 // pred_region
          _
        $region16: #{tpu_custom_call.1} parent=11 // pred_fallthru
          _
        // Predicated region
        $region17: #{tpu_custom_call.1} parent=11 // pred_check
          %p214 = pneg %p86
        $region18: #{tpu_custom_call.1} parent=11 // pred_check_branch
          %216 = sbr.rel (%p214) target = $region20
        $region19: #{tpu_custom_call.1} parent=11 // pred_region
          _
        $region20: #{tpu_custom_call.1} parent=11 // pred_fallthru
          _
        // Predicated region
        $region21: #{tpu_custom_call.1} parent=11 // pred_check
          %p217 = pneg %p107
        $region22: #{tpu_custom_call.1} parent=11 // pred_check_branch
          %219 = sbr.rel (%p217) target = $region24
        $region23: #{tpu_custom_call.1} parent=11 // pred_region
          _
        $region24: #{tpu_custom_call.1} parent=11 // pred_fallthru
          _
        // Predicated region
        $region25: #{tpu_custom_call.1} parent=11 // pred_check
          %p220 = pneg %p128
        $region26: #{tpu_custom_call.1} parent=11 // pred_check_branch
          %222 = sbr.rel (%p220) target = $region28
        $region27: #{tpu_custom_call.1} parent=11 // pred_region
          _
        $region28: #{tpu_custom_call.1} parent=11 // pred_fallthru
          _
        // Predicated region
        $region29: #{tpu_custom_call.1} parent=11 // pred_check
          %p223 = pneg %p149
        $region30: #{tpu_custom_call.1} parent=11 // pred_check_branch
          %225 = sbr.rel (%p223) target = $region32
        $region31: #{tpu_custom_call.1} parent=11 // pred_region
          _
        $region32: #{tpu_custom_call.1} parent=11 // pred_fallthru
          _
        // Predicated region
        $region33: #{tpu_custom_call.1} parent=11 // pred_check
          %p226 = pneg %p170
        $region34: #{tpu_custom_call.1} parent=11 // pred_check_branch
          %228 = sbr.rel (%p226) target = $region36
        $region35: #{tpu_custom_call.1} parent=11 // pred_region
          _
        $region36: #{tpu_custom_call.1} parent=11 // pred_fallthru
          _
      $region12: #{tpu_custom_call.1} parent=5 // pred_fallthru
        _
      %p229 = scmp.lt.s32.totalorder %s18, 4
      // Predicated region
      $region37: #{tpu_custom_call.1} parent=5 // pred_check
        %p230 = pneg %p229
      $region38: #{tpu_custom_call.1} parent=5 // pred_check_branch
        %232 = sbr.rel (%p230) target = $region40
      $region39: #{tpu_custom_call.1} parent=5 // pred_region
        // Predicated region
        $region41: #{tpu_custom_call.1} parent=39 // pred_check
          %p233 = pneg %p38
        $region42: #{tpu_custom_call.1} parent=39 // pred_check_branch
          %235 = sbr.rel (%p233) target = $region44
        $region43: #{tpu_custom_call.1} parent=39 // pred_region
          %s236 = smul.u32 32, %s18
          %p237 = scmp.lt.s32.totalorder %s236, 127
          %s238 = scalar_select %p237, %s236, 127
          %s239 = smul.addr %s238, 8
          %s240 = scalar_lea.vmem %s0, %s239
          %s241 = smul.u32 32, %s18
        $region44: #{tpu_custom_call.1} parent=39 // pred_fallthru
          _
      $region40: #{tpu_custom_call.1} parent=5 // pred_fallthru
        _
      %p242 = scmp.le.s32.totalorder 1, %s18
      %p243 = scmp.lt.s32.totalorder %s18, 5
      %p244 = pnand %p242, %p243
      %p245 = pneg %p244
      // Predicated region
      $region45: #{tpu_custom_call.1} parent=5 // pred_check
        _
      $region46: #{tpu_custom_call.1} parent=5 // pred_check_branch
        %247 = sbr.rel (%p244) target = $region48
      $region47: #{tpu_custom_call.1} parent=5 // pred_region
        %s248 = ssub.s32 %s18, 1
        %s249 = smul.u32 32, %s23
        %p250 = scmp.lt.s32.totalorder %s249, 127
        %s251 = scalar_select %p250, %s249, 127
        %s252 = smul.addr %s251, 8
        %s253 = scalar_lea.vmem %s0, %s252
        %p254 = pneg %p44
        %p255 = pneg %p41
        %p256 = pneg %p65
        %p257 = pneg %p62
        %p258 = pneg %p86
        %p259 = pneg %p83
        %p260 = pneg %p107
        %p261 = pneg %p104
        %p262 = pneg %p128
        %p263 = pneg %p125
        %p264 = pneg %p149
        %p265 = pneg %p146
        %p266 = pneg %p170
        %p267 = pneg %p167
        %p268 = pneg %p196
        %p269 = pneg %p193
        %s270 = sand.u32 %s183, 1
        %s271 = scalar_lea.sflag [#allocation4], %s270
        %s272 = sand.u32 %s183, 1
        %s273 = smul.addr %s272, 2
        %s274 = scalar_lea.vmem [#allocation3], %s273
        %s275 = smul.u32 32, %s23
        %p276 = scmp.lt.s32.totalorder %s275, 127
        %s277 = scalar_select %p276, %s275, 127
        %s278 = smul.addr %s277, 8
        %s279 = scalar_lea.vmem %s0, %s278
        %s280 = smul.u32 32, %s23
        %s281 = smul.u32 2, %s23
        %v283 = vld [vmem:[%s1] sm:$0xf]
        %v284 = vld [vmem:[%s1 + $0x4] sm:$0xf]
        %v285 = vld [vmem:[%s1 + $0x8] sm:$0xf]
        %v286 = vld [vmem:[%s1 + $0xc] sm:$0xf]
        %v287 = vld [vmem:[%s1 + $0x10] sm:$0xf]
        %v288 = vld [vmem:[%s1 + $0x14] sm:$0xf]
        %v289 = vld [vmem:[%s1 + $0x18] sm:$0xf]
        %v290 = vld [vmem:[%s1 + $0x1c] sm:$0xf]
        %v291 = vld [vmem:[%s2] sm:$0xf]
        %v292 = vld [vmem:[%s2 + $0x4] sm:$0xf]
        %v293 = vld [vmem:[%s2 + $0x8] sm:$0xf]
        %v294 = vld [vmem:[%s2 + $0xc] sm:$0xf]
        %v295 = vld [vmem:[%s2 + $0x10] sm:$0xf]
        %v296 = vld [vmem:[%s2 + $0x14] sm:$0xf]
        %v297 = vld [vmem:[%s2 + $0x18] sm:$0xf]
        %v298 = vld [vmem:[%s2 + $0x1c] sm:$0xf]
        %v299 = vld [vmem:[%s3] sm:$0xf]
        %v300 = vld [vmem:[%s3 + $0x4] sm:$0xf]
        %v301 = vld [vmem:[%s3 + $0x8] sm:$0xf]
        %v302 = vld [vmem:[%s3 + $0xc] sm:$0xf]
        %v303 = vld [vmem:[%s4] sm:$0xf]
        %v304 = vld [vmem:[%s4 + $0x4] sm:$0xf]
        %v305 = vld [vmem:[%s4 + $0x8] sm:$0xf]
        %v306 = vld [vmem:[%s4 + $0xc] sm:$0xf]
        %v307 = vld [vmem:[%s5] sm:$0x1]
        %v308 = vld [vmem:[#allocation2] sm:$0x1]
        %v309 = vld [vmem:[%s279] sm:$0xff]
        %v310 = vld [vmem:[%s279 + $0x8] sm:$0xff]
        %v311 = vld [vmem:[%s279 + $0x10] sm:$0xff]
        %v312 = vld [vmem:[%s279 + $0x18] sm:$0xff]
        %v313 = vld [vmem:[%s279 + $0x20] sm:$0xff]
        %v314 = vld [vmem:[%s279 + $0x28] sm:$0xff]
        %v315 = vld [vmem:[%s279 + $0x30] sm:$0xff]
        %v316 = vld [vmem:[%s279 + $0x38] sm:$0xff]
        %v317 = vld [vmem:[%s279 + $0x40] sm:$0xff]
        %v318 = vld [vmem:[%s279 + $0x48] sm:$0xff]
        %v319 = vld [vmem:[%s279 + $0x50] sm:$0xff]
        %v320 = vld [vmem:[%s279 + $0x58] sm:$0xff]
        %v321 = vld [vmem:[%s279 + $0x60] sm:$0xff]
        %v322 = vld [vmem:[%s279 + $0x68] sm:$0xff]
        %v323 = vld [vmem:[%s279 + $0x70] sm:$0xff]
        %v324 = vld [vmem:[%s279 + $0x78] sm:$0xff]
        %v325 = vld [vmem:[%s279 + $0x80] sm:$0xff]
        %v326 = vld [vmem:[%s279 + $0x88] sm:$0xff]
        %v327 = vld [vmem:[%s279 + $0x90] sm:$0xff]
        %v328 = vld [vmem:[%s279 + $0x98] sm:$0xff]
        %v329 = vld [vmem:[%s279 + $0xa0] sm:$0xff]
        %v330 = vld [vmem:[%s279 + $0xa8] sm:$0xff]
        %v331 = vld [vmem:[%s279 + $0xb0] sm:$0xff]
        %v332 = vld [vmem:[%s279 + $0xb8] sm:$0xff]
        %v333 = vld [vmem:[%s279 + $0xc0] sm:$0xff]
        %v334 = vld [vmem:[%s279 + $0xc8] sm:$0xff]
        %v335 = vld [vmem:[%s279 + $0xd0] sm:$0xff]
        %v336 = vld [vmem:[%s279 + $0xd8] sm:$0xff]
        %v337 = vld [vmem:[%s279 + $0xe0] sm:$0xff]
        %v338 = vld [vmem:[%s279 + $0xe8] sm:$0xff]
        %v339 = vld [vmem:[%s279 + $0xf0] sm:$0xff]
        %v340 = vld [vmem:[%s279 + $0xf8] sm:$0xff]
        %341 = vxpose.xlu0.b32.start [1/16] %v309, 128
        %342 = vxpose.xlu0.b32.cont [2/16] %v310, 128
        %343 = vxpose.xlu0.b32.cont [3/16] %v311, 128
        %344 = vxpose.xlu0.b32.cont [4/16] %v312, 128
        %345 = vxpose.xlu0.b32.cont [5/16] %v313, 128
        %346 = vxpose.xlu0.b32.cont [6/16] %v314, 128
        %347 = vxpose.xlu0.b32.cont [7/16] %v315, 128
        %348 = vxpose.xlu0.b32.cont [8/16] %v316, 128
        %349 = vxpose.xlu0.b32.cont [9/16] %v317, 128
        %350 = vxpose.xlu0.b32.cont [10/16] %v318, 128
        %351 = vxpose.xlu0.b32.cont [11/16] %v319, 128
        %352 = vxpose.xlu0.b32.cont [12/16] %v320, 128
        %353 = vxpose.xlu0.b32.cont [13/16] %v321, 128
        %354 = vxpose.xlu0.b32.cont [14/16] %v322, 128
        %355 = vxpose.xlu0.b32.cont [15/16] %v323, 128
        %356 = vxpose.xlu0.b32.end [16/16] %v324, 128
        %v357 = vpop.trf.xlu0
        %v358 = vpop.trf.xlu0
        %v359 = vpop.trf.xlu0
        %v360 = vpop.trf.xlu0
        %v361 = vpop.trf.xlu0
        %v362 = vpop.trf.xlu0
        %v363 = vpop.trf.xlu0
        %v364 = vpop.trf.xlu0
        %v365 = vpop.trf.xlu0
        %v366 = vpop.trf.xlu0
        %v367 = vpop.trf.xlu0
        %v368 = vpop.trf.xlu0
        %v369 = vpop.trf.xlu0
        %v370 = vpop.trf.xlu0
        %v371 = vpop.trf.xlu0
        %v372 = vpop.trf.xlu0
        %373 = vxpose.xlu0.b32.start [1/16] %v325, 128
        %374 = vxpose.xlu0.b32.cont [2/16] %v326, 128
        %375 = vxpose.xlu0.b32.cont [3/16] %v327, 128
        %376 = vxpose.xlu0.b32.cont [4/16] %v328, 128
        %377 = vxpose.xlu0.b32.cont [5/16] %v329, 128
        %378 = vxpose.xlu0.b32.cont [6/16] %v330, 128
        %379 = vxpose.xlu0.b32.cont [7/16] %v331, 128
        %380 = vxpose.xlu0.b32.cont [8/16] %v332, 128
        %381 = vxpose.xlu0.b32.cont [9/16] %v333, 128
        %382 = vxpose.xlu0.b32.cont [10/16] %v334, 128
        %383 = vxpose.xlu0.b32.cont [11/16] %v335, 128
        %384 = vxpose.xlu0.b32.cont [12/16] %v336, 128
        %385 = vxpose.xlu0.b32.cont [13/16] %v337, 128
        %386 = vxpose.xlu0.b32.cont [14/16] %v338, 128
        %387 = vxpose.xlu0.b32.cont [15/16] %v339, 128
        %388 = vxpose.xlu0.b32.end [16/16] %v340, 128
        %v389 = vpop.trf.xlu0
        %v390 = vpop.trf.xlu0
        %v391 = vpop.trf.xlu0
        %v392 = vpop.trf.xlu0
        %v393 = vpop.trf.xlu0
        %v394 = vpop.trf.xlu0
        %v395 = vpop.trf.xlu0
        %v396 = vpop.trf.xlu0
        %v397 = vpop.trf.xlu0
        %v398 = vpop.trf.xlu0
        %v399 = vpop.trf.xlu0
        %v400 = vpop.trf.xlu0
        %v401 = vpop.trf.xlu0
        %v402 = vpop.trf.xlu0
        %v403 = vpop.trf.xlu0
        %v404 = vpop.trf.xlu0
        %v405 = vpack.c.bf16 %v358, %v357
        %v406 = vpack.c.bf16 %v390, %v389
        %v415 = vunpack.c.l.b16 %v283
        %v416 = vunpack.c.l.b16 %v284
        %v417 = vunpack.c.l.b16 %v285
        %v418 = vunpack.c.l.b16 %v286
        %v419 = vunpack.c.l.b16 %v287
        %v420 = vunpack.c.l.b16 %v288
        %v421 = vunpack.c.l.b16 %v289
        %v422 = vunpack.c.l.b16 %v290
        %v423 = vpack.c.b16 %v416, %v415
        %v424 = vpack.c.b16 %v418, %v417
        %v425 = vpack.c.b16 %v420, %v419
        %v426 = vpack.c.b16 %v422, %v421
        %vm427 = vcmask 130048
        %v429 = vsel %vm427, %v423, 0
        %v432 = vsel %vm427, %v424, 0
        %v435 = vsel %vm427, %v425, 0
        %v438 = vsel %vm427, %v426, 0
        %440 = vmatpush.bf16.msra.mxu0 0
        %441 = vmatpush.bf16.msra.mxu0 0
        %442 = vmatpush.bf16.msra.mxu0 0
        %443 = vmatpush.bf16.msra.mxu0 0
        %444 = vmatpush.bf16.msra.mxu0 0
        %445 = vmatpush.bf16.msra.mxu0 0
        %446 = vmatpush.bf16.msra.mxu0 0
        %447 = vmatpush.bf16.msra.mxu0 %v405
        %448 = vmatmul.bf16.gmra.mxu0 %v429
        %v449 = vpop.f32.mrf.mxu0
        %v450 = vadd.f32 0.0, %v449
        %v451 = vpop.f32.mrf.mxu0
        %v452 = vadd.f32 0.0, %v451
        %453 = vmatmul.bf16.gmra.mxu0 %v432
        %v454 = vpop.f32.mrf.mxu0
        %v455 = vadd.f32 0.0, %v454
        %v456 = vpop.f32.mrf.mxu0
        %v457 = vadd.f32 0.0, %v456
        %458 = vmatmul.bf16.gmra.mxu0 %v435
        %v459 = vpop.f32.mrf.mxu0
        %v460 = vadd.f32 0.0, %v459
        %v461 = vpop.f32.mrf.mxu0
        %v462 = vadd.f32 0.0, %v461
        %463 = vmatmul.bf16.gmra.mxu0 %v438
        %v464 = vpop.f32.mrf.mxu0
        %v465 = vadd.f32 0.0, %v464
        %v466 = vpop.f32.mrf.mxu0
        %v467 = vadd.f32 0.0, %v466
        %468 = vdwg.mxu0
        %469 = vmatpush.bf16.msra.mxu0 0
        %470 = vmatpush.bf16.msra.mxu0 0
        %471 = vmatpush.bf16.msra.mxu0 0
        %472 = vmatpush.bf16.msra.mxu0 0
        %473 = vmatpush.bf16.msra.mxu0 0
        %474 = vmatpush.bf16.msra.mxu0 0
        %475 = vmatpush.bf16.msra.mxu0 0
        %476 = vmatpush.bf16.msra.mxu0 %v406
        %477 = vmatmul.bf16.gmra.mxu0 %v429
        %v478 = vpop.f32.mrf.mxu0
        %v479 = vadd.f32 0.0, %v478
        %v480 = vpop.f32.mrf.mxu0
        %v481 = vadd.f32 0.0, %v480
        %482 = vmatmul.bf16.gmra.mxu0 %v432
        %v483 = vpop.f32.mrf.mxu0
        %v484 = vadd.f32 0.0, %v483
        %v485 = vpop.f32.mrf.mxu0
        %v486 = vadd.f32 0.0, %v485
        %487 = vmatmul.bf16.gmra.mxu0 %v435
        %v488 = vpop.f32.mrf.mxu0
        %v489 = vadd.f32 0.0, %v488
        %v490 = vpop.f32.mrf.mxu0
        %v491 = vadd.f32 0.0, %v490
        %492 = vmatmul.bf16.gmra.mxu0 %v438
        %v493 = vpop.f32.mrf.mxu0
        %v494 = vadd.f32 0.0, %v493
        %v495 = vpop.f32.mrf.mxu0
        %v496 = vadd.f32 0.0, %v495
        %497 = vdwg.mxu0
        %v498 = vpack.c.bf16 %v479, %v450
        %v499 = vpack.c.bf16 %v481, %v452
        %v500 = vpack.c.bf16 %v484, %v455
        %v501 = vpack.c.bf16 %v486, %v457
        %v502 = vpack.c.bf16 %v489, %v460
        %v503 = vpack.c.bf16 %v491, %v462
        %v504 = vpack.c.bf16 %v494, %v465
        %v505 = vpack.c.bf16 %v496, %v467
        %507 = vset.pattern.permute.xlu0 0
        %508 = vperm.xlu0 %507, %v291
        %v509 = vpop.permute.xlu0 %508
        %v512 = vunpack.c.l.s4 839922192
        %v513 = vunpack.c.0.s8 %v512
        %v514 = vperm.slane %v509, %v513
        %516 = vset.pattern.permute.xlu0 0
        %517 = vperm.xlu0 %516, %v292
        %v518 = vpop.permute.xlu0 %517
        %v521 = vunpack.c.l.s4 839922192
        %v522 = vunpack.c.0.s8 %v521
        %v523 = vperm.slane %v518, %v522
        %525 = vset.pattern.permute.xlu0 0
        %526 = vperm.xlu0 %525, %v293
        %v527 = vpop.permute.xlu0 %526
        %v530 = vunpack.c.l.s4 839922192
        %v531 = vunpack.c.0.s8 %v530
        %v532 = vperm.slane %v527, %v531
        %534 = vset.pattern.permute.xlu0 0
        %535 = vperm.xlu0 %534, %v294
        %v536 = vpop.permute.xlu0 %535
        %v539 = vunpack.c.l.s4 839922192
        %v540 = vunpack.c.0.s8 %v539
        %v541 = vperm.slane %v536, %v540
        %543 = vset.pattern.permute.xlu0 0
        %544 = vperm.xlu0 %543, %v295
        %v545 = vpop.permute.xlu0 %544
        %v548 = vunpack.c.l.s4 839922192
        %v549 = vunpack.c.0.s8 %v548
        %v550 = vperm.slane %v545, %v549
        %552 = vset.pattern.permute.xlu0 0
        %553 = vperm.xlu0 %552, %v296
        %v554 = vpop.permute.xlu0 %553
        %v557 = vunpack.c.l.s4 839922192
        %v558 = vunpack.c.0.s8 %v557
        %v559 = vperm.slane %v554, %v558
        %561 = vset.pattern.permute.xlu0 0
        %562 = vperm.xlu0 %561, %v297
        %v563 = vpop.permute.xlu0 %562
        %v566 = vunpack.c.l.s4 839922192
        %v567 = vunpack.c.0.s8 %v566
        %v568 = vperm.slane %v563, %v567
        %570 = vset.pattern.permute.xlu0 0
        %571 = vperm.xlu0 %570, %v298
        %v572 = vpop.permute.xlu0 %571
        %v575 = vunpack.c.l.s4 839922192
        %v576 = vunpack.c.0.s8 %v575
        %v577 = vperm.slane %v572, %v576
        %v578 = vunpack.c.l.bf16 %v498
        %v579 = vunpack.c.h.bf16 %v498
        %v580 = vunpack.c.l.bf16 %v499
        %v581 = vunpack.c.h.bf16 %v499
        %v582 = vunpack.c.l.bf16 %v500
        %v583 = vunpack.c.h.bf16 %v500
        %v584 = vunpack.c.l.bf16 %v501
        %v585 = vunpack.c.h.bf16 %v501
        %v586 = vunpack.c.l.bf16 %v502
        %v587 = vunpack.c.h.bf16 %v502
        %v588 = vunpack.c.l.bf16 %v503
        %v589 = vunpack.c.h.bf16 %v503
        %v590 = vunpack.c.l.bf16 %v504
        %v591 = vunpack.c.h.bf16 %v504
        %v592 = vunpack.c.l.bf16 %v505
        %v593 = vunpack.c.h.bf16 %v505
        %v594 = vunpack.c.l.bf16 %v514
        %v595 = vunpack.c.l.bf16 %v523
        %v596 = vunpack.c.l.bf16 %v532
        %v597 = vunpack.c.l.bf16 %v541
        %v598 = vunpack.c.l.bf16 %v550
        %v599 = vunpack.c.l.bf16 %v559
        %v600 = vunpack.c.l.bf16 %v568
        %v601 = vunpack.c.l.bf16 %v577
        %v602 = vadd.f32 %v578, %v594
        %v603 = vadd.f32 %v579, %v594
        %v604 = vadd.f32 %v580, %v595
        %v605 = vadd.f32 %v581, %v595
        %v606 = vadd.f32 %v582, %v596
        %v607 = vadd.f32 %v583, %v596
        %v608 = vadd.f32 %v584, %v597
        %v609 = vadd.f32 %v585, %v597
        %v610 = vadd.f32 %v586, %v598
        %v611 = vadd.f32 %v587, %v598
        %v612 = vadd.f32 %v588, %v599
        %v613 = vadd.f32 %v589, %v599
        %v614 = vadd.f32 %v590, %v600
        %v615 = vadd.f32 %v591, %v600
        %v616 = vadd.f32 %v592, %v601
        %v617 = vadd.f32 %v593, %v601
        %v618 = vpack.c.bf16 %v603, %v602
        %v619 = vpack.c.bf16 %v605, %v604
        %v620 = vpack.c.bf16 %v607, %v606
        %v621 = vpack.c.bf16 %v609, %v608
        %v622 = vpack.c.bf16 %v611, %v610
        %v623 = vpack.c.bf16 %v613, %v612
        %v624 = vpack.c.bf16 %v615, %v614
        %v625 = vpack.c.bf16 %v617, %v616
        %v626 = vunpack.c.l.bf16 %v618
        %v627 = vunpack.c.h.bf16 %v618
        %v628 = vunpack.c.l.bf16 %v619
        %v629 = vunpack.c.h.bf16 %v619
        %v630 = vunpack.c.l.bf16 %v620
        %v631 = vunpack.c.h.bf16 %v620
        %v632 = vunpack.c.l.bf16 %v621
        %v633 = vunpack.c.h.bf16 %v621
        %v634 = vunpack.c.l.bf16 %v622
        %v635 = vunpack.c.h.bf16 %v622
        %v636 = vunpack.c.l.bf16 %v623
        %v637 = vunpack.c.h.bf16 %v623
        %v638 = vunpack.c.l.bf16 %v624
        %v639 = vunpack.c.h.bf16 %v624
        %v640 = vunpack.c.l.bf16 %v625
        %v641 = vunpack.c.h.bf16 %v625
        %v642 = vmax.f32 %v626, 0.0
        %v643 = vmax.f32 %v627, 0.0
        %v644 = vmax.f32 %v628, 0.0
        %v645 = vmax.f32 %v629, 0.0
        %v646 = vmax.f32 %v630, 0.0
        %v647 = vmax.f32 %v631, 0.0
        %v648 = vmax.f32 %v632, 0.0
        %v649 = vmax.f32 %v633, 0.0
        %v650 = vmax.f32 %v634, 0.0
        %v651 = vmax.f32 %v635, 0.0
        %v652 = vmax.f32 %v636, 0.0
        %v653 = vmax.f32 %v637, 0.0
        %v654 = vmax.f32 %v638, 0.0
        %v655 = vmax.f32 %v639, 0.0
        %v656 = vmax.f32 %v640, 0.0
        %v657 = vmax.f32 %v641, 0.0
        %v658 = vpack.c.bf16 %v644, %v642
        %v659 = vpack.c.bf16 %v645, %v643
        %v660 = vpack.c.bf16 %v648, %v646
        %v661 = vpack.c.bf16 %v649, %v647
        %v662 = vpack.c.bf16 %v652, %v650
        %v663 = vpack.c.bf16 %v653, %v651
        %v664 = vpack.c.bf16 %v656, %v654
        %v665 = vpack.c.bf16 %v657, %v655
        %v670 = vunpack.c.l.b16 %v299
        %v671 = vunpack.c.l.b16 %v300
        %v672 = vunpack.c.l.b16 %v301
        %v673 = vunpack.c.l.b16 %v302
        %v674 = vpack.c.b16 %v671, %v670
        %v675 = vpack.c.b16 %v673, %v672
        %vm676 = vcmask 523264
        %v678 = vsel %vm676, %v674, 0
        %v681 = vsel %vm676, %v675, 0
        %683 = vmatpush.bf16.msra.mxu0 0
        %684 = vmatpush.bf16.msra.mxu0 0
        %685 = vmatpush.bf16.msra.mxu0 0
        %686 = vmatpush.bf16.msra.mxu0 0
        %687 = vmatpush.bf16.msra.mxu0 %v664
        %688 = vmatpush.bf16.msra.mxu0 %v662
        %689 = vmatpush.bf16.msra.mxu0 %v660
        %690 = vmatpush.bf16.msra.mxu0 %v658
        %691 = vmatmul.bf16.gmra.mxu0 %v678
        %v692 = vpop.f32.mrf.mxu0
        %v693 = vadd.f32 0.0, %v692
        %v694 = vpop.f32.mrf.mxu0
        %v695 = vadd.f32 0.0, %v694
        %696 = vmatmul.bf16.gmra.mxu0 %v681
        %v697 = vpop.f32.mrf.mxu0
        %v698 = vadd.f32 0.0, %v697
        %v699 = vpop.f32.mrf.mxu0
        %v700 = vadd.f32 0.0, %v699
        %701 = vdwg.mxu0
        %702 = vmatpush.bf16.msra.mxu0 0
        %703 = vmatpush.bf16.msra.mxu0 0
        %704 = vmatpush.bf16.msra.mxu0 0
        %705 = vmatpush.bf16.msra.mxu0 0
        %706 = vmatpush.bf16.msra.mxu0 %v665
        %707 = vmatpush.bf16.msra.mxu0 %v663
        %708 = vmatpush.bf16.msra.mxu0 %v661
        %709 = vmatpush.bf16.msra.mxu0 %v659
        %710 = vmatmul.bf16.gmra.mxu0 %v678
        %v711 = vpop.f32.mrf.mxu0
        %v712 = vadd.f32 0.0, %v711
        %v713 = vpop.f32.mrf.mxu0
        %v714 = vadd.f32 0.0, %v713
        %715 = vmatmul.bf16.gmra.mxu0 %v681
        %v716 = vpop.f32.mrf.mxu0
        %v717 = vadd.f32 0.0, %v716
        %v718 = vpop.f32.mrf.mxu0
        %v719 = vadd.f32 0.0, %v718
        %720 = vdwg.mxu0
        %v721 = vpack.c.bf16 %v712, %v693
        %v722 = vpack.c.bf16 %v714, %v695
        %v723 = vpack.c.bf16 %v717, %v698
        %v724 = vpack.c.bf16 %v719, %v700
        %726 = vset.pattern.permute.xlu0 0
        %727 = vperm.xlu0 %726, %v303
        %v728 = vpop.permute.xlu0 %727
        %v731 = vunpack.c.l.s4 839922192
        %v732 = vunpack.c.0.s8 %v731
        %v733 = vperm.slane %v728, %v732
        %735 = vset.pattern.permute.xlu0 0
        %736 = vperm.xlu0 %735, %v304
        %v737 = vpop.permute.xlu0 %736
        %v740 = vunpack.c.l.s4 839922192
        %v741 = vunpack.c.0.s8 %v740
        %v742 = vperm.slane %v737, %v741
        %744 = vset.pattern.permute.xlu0 0
        %745 = vperm.xlu0 %744, %v305
        %v746 = vpop.permute.xlu0 %745
        %v749 = vunpack.c.l.s4 839922192
        %v750 = vunpack.c.0.s8 %v749
        %v751 = vperm.slane %v746, %v750
        %753 = vset.pattern.permute.xlu0 0
        %754 = vperm.xlu0 %753, %v306
        %v755 = vpop.permute.xlu0 %754
        %v758 = vunpack.c.l.s4 839922192
        %v759 = vunpack.c.0.s8 %v758
        %v760 = vperm.slane %v755, %v759
        %v761 = vunpack.c.l.bf16 %v721
        %v762 = vunpack.c.h.bf16 %v721
        %v763 = vunpack.c.l.bf16 %v722
        %v764 = vunpack.c.h.bf16 %v722
        %v765 = vunpack.c.l.bf16 %v723
        %v766 = vunpack.c.h.bf16 %v723
        %v767 = vunpack.c.l.bf16 %v724
        %v768 = vunpack.c.h.bf16 %v724
        %v769 = vunpack.c.l.bf16 %v733
        %v770 = vunpack.c.l.bf16 %v742
        %v771 = vunpack.c.l.bf16 %v751
        %v772 = vunpack.c.l.bf16 %v760
        %v773 = vadd.f32 %v761, %v769
        %v774 = vadd.f32 %v762, %v769
        %v775 = vadd.f32 %v763, %v770
        %v776 = vadd.f32 %v764, %v770
        %v777 = vadd.f32 %v765, %v771
        %v778 = vadd.f32 %v766, %v771
        %v779 = vadd.f32 %v767, %v772
        %v780 = vadd.f32 %v768, %v772
        %v781 = vpack.c.bf16 %v774, %v773
        %v782 = vpack.c.bf16 %v776, %v775
        %v783 = vpack.c.bf16 %v778, %v777
        %v784 = vpack.c.bf16 %v780, %v779
        %v785 = vunpack.c.l.bf16 %v781
        %v786 = vunpack.c.h.bf16 %v781
        %v787 = vunpack.c.l.bf16 %v782
        %v788 = vunpack.c.h.bf16 %v782
        %v789 = vunpack.c.l.bf16 %v783
        %v790 = vunpack.c.h.bf16 %v783
        %v791 = vunpack.c.l.bf16 %v784
        %v792 = vunpack.c.h.bf16 %v784
        %v793 = vmax.f32 %v785, 0.0
        %v794 = vmax.f32 %v786, 0.0
        %v795 = vmax.f32 %v787, 0.0
        %v796 = vmax.f32 %v788, 0.0
        %v797 = vmax.f32 %v789, 0.0
        %v798 = vmax.f32 %v790, 0.0
        %v799 = vmax.f32 %v791, 0.0
        %v800 = vmax.f32 %v792, 0.0
        %v801 = vpack.c.bf16 %v795, %v793
        %v802 = vpack.c.bf16 %v796, %v794
        %v803 = vpack.c.bf16 %v799, %v797
        %v804 = vpack.c.bf16 %v800, %v798
        %806 = vset.pattern.permute.xlu0 0
        %807 = vperm.xlu0 %806, %v308
        %v808 = vpop.permute.xlu0 %807
        %v810 = vperm.slane %v808, 0
        %vm811 = vcmask 261120
        %v813 = vsel %vm811, %v307, 0
        %815 = vmatpush.bf16.msra.mxu0 0
        %816 = vmatpush.bf16.msra.mxu0 0
        %817 = vmatpush.bf16.msra.mxu0 0
        %818 = vmatpush.bf16.msra.mxu0 0
        %819 = vmatpush.bf16.msra.mxu0 0
        %820 = vmatpush.bf16.msra.mxu0 0
        %821 = vmatpush.bf16.msra.mxu0 %v803
        %822 = vmatpush.bf16.msra.mxu0 %v801
        %823 = vmatmul.bf16.gmra.mxu0 %v813
        %v824 = vpop.f32.mrf.mxu0
        %v825 = vadd.f32 %v810, %v824
        %v826 = vpop.f32.mrf.mxu0
        %827 = vdwg.mxu0
        %828 = vmatpush.bf16.msra.mxu0 0
        %829 = vmatpush.bf16.msra.mxu0 0
        %830 = vmatpush.bf16.msra.mxu0 0
        %831 = vmatpush.bf16.msra.mxu0 0
        %832 = vmatpush.bf16.msra.mxu0 0
        %833 = vmatpush.bf16.msra.mxu0 0
        %834 = vmatpush.bf16.msra.mxu0 %v804
        %835 = vmatpush.bf16.msra.mxu0 %v802
        %836 = vmatmul.bf16.gmra.mxu0 %v813
        %v837 = vpop.f32.mrf.mxu0
        %v838 = vadd.f32 %v810, %v837
        %v839 = vpop.f32.mrf.mxu0
        %840 = vdwg.mxu0
        %v843 = vrot.slane %v838, 7
        %vm844 = vcmask 1040384
        %v845 = vsel %vm844, %v825, %v843
        %v847 = vlaneseq
        %vm848 = vcmp.ge.s32.totalorder %v847, 0
        %vm849 = vcmp.lt.s32.totalorder %v847, 256
        %vm850 = vmand %vm848, %vm849
        %851 = vst.msk [vmem:[%s274] sm:$0x3] %vm850, %v845
        %s852 = sand.u32 %s183, 1
        %s853 = scalar_lea.sflag [#allocation4], %s852
        %s854 = sand.u32 %s183, 1
        %s855 = smul.addr %s854, 2
        %s856 = scalar_lea.vmem [#allocation3], %s855
        // Predicated region
        $region49: #{tpu_custom_call.1} parent=47 // pred_check
          %p857 = pneg %p193
        $region50: #{tpu_custom_call.1} parent=47 // pred_check_branch
          %859 = sbr.rel (%p857) target = $region52
        $region51: #{tpu_custom_call.1} parent=47 // pred_region
          %s860 = smul.u32 2, %s23
          %862 = vsyncadd %s853, 0
          %s863 = scalar_lea.hbm %s7, %s860
          %s865 = sshll.u32 %s856, 4
          %s866 = int_to_ptr.vmem [resolvable:$true] %s865
          %s867 = sshll.u32 %s863, 4
          %s868 = int_to_ptr.hbm [resolvable:$true] %s867
          %870 = dma.vmem_to_hbm [thread:$0]  %s866, 32, %s868, %s853
        $region52: #{tpu_custom_call.1} parent=47 // pred_fallthru
          _
      $region48: #{tpu_custom_call.1} parent=5 // pred_fallthru
        _
      %p871 = scmp.le.s32.totalorder 2, %s18
      // Predicated region
      $region53: #{tpu_custom_call.1} parent=5 // pred_check
        %p872 = pneg %p871
      $region54: #{tpu_custom_call.1} parent=5 // pred_check_branch
        %874 = sbr.rel (%p872) target = $region56
      $region55: #{tpu_custom_call.1} parent=5 // pred_region
        %s875 = ssub.s32 %s18, 2
        // Predicated region
        $region57: #{tpu_custom_call.1} parent=55 // pred_check
          %p876 = pneg %p199
        $region58: #{tpu_custom_call.1} parent=55 // pred_check_branch
          %878 = sbr.rel (%p876) target = $region60
        $region59: #{tpu_custom_call.1} parent=55 // pred_region
          %s879 = sand.u32 %s184, 1
          %s880 = scalar_lea.sflag [#allocation4], %s879
          %s881 = sand.u32 %s184, 1
          %s882 = smul.addr %s881, 2
          %s883 = scalar_lea.vmem [#allocation3], %s882
          %885 = dma.done %s880, 32
        $region60: #{tpu_custom_call.1} parent=55 // pred_fallthru
          _
      $region56: #{tpu_custom_call.1} parent=5 // pred_fallthru
        _
    $region6: #{tpu_custom_call.1} parent=1 // loop_footer
      %s22 = sadd.s32 1, %s18
    $region7: #{tpu_custom_call.1} parent=1 // loop_footer_branch
      %17 = sbr.rel target = $region3
    $region8: #{tpu_custom_call.1} parent=1 // loop_exit
      _
    %886 = vsyncpa [#allocation4], 1
    %s887 = scalar_lea.sflag [#allocation4], 1
    %888 = vsyncpa %s887, 1

</llo_original>
